<compile_context>
chip_gen: v7x
topology: tpu7x:2x2x1
jax: 0.10.0
libtpu: 0.0.40
codegen_flags: <defaults>
</compile_context>

<pallas_src>
import functools

import jax
import jax.numpy as jnp
import numpy as np
from jax import lax
from jax.experimental import pallas as pl
from jax.experimental.pallas import tpu as pltpu

_NORM_EPS = 1e-12   # F.normalize eps
_REM_EPS = 1e-05    # residual renorm eps in _singularValuePowerNorm


def _svpn_kernel(w_ref, x_ref, o_ref, *, alpha, iter_num, sv_num, d, N):
    """One grid step: TB batch elements in a flat (TB, d*N) batch-on-sublane block."""
    w = w_ref[...].astype(jnp.float32)                      # (1, d) learned init vector
    eps2 = jnp.float32(_NORM_EPS * _NORM_EPS)

    def load_row(i):                                        # row i of X: (TB, N)
        return x_ref[:, i * N:(i + 1) * N].astype(jnp.float32)

    x_rows = None      # deflated X rows (materialized only when sv_num > 1)
    y_rows = None      # accumulated s^alpha * v u^T rows from earlier sv steps

    def row(i):
        return load_row(i) if x_rows is None else x_rows[i]

    for step in range(sv_num):
        # ---- power iteration (v re-initialized from the weight each sv step) ----
        v_rows = [w[:, i:i + 1] for i in range(d)]          # d x (1, 1) / (TB, 1)
        u = None
        v_n2 = inv_vn = None
        for _ in range(iter_num):
            # u_raw[b, n] = sum_i x[b, i, n] * v[b, i]      (VPU FMAs over d rows)
            u_raw = row(0) * v_rows[0]
            for i in range(1, d):
                u_raw = u_raw + row(i) * v_rows[i]
            u_n2 = jnp.sum(u_raw * u_raw, axis=-1, keepdims=True)          # (TB, 1)
            u = u_raw * lax.rsqrt(jnp.maximum(u_n2, eps2))                 # (TB, N)
            # v_raw[b, i] = sum_n x[b, i, n] * u[b, n]      (lane reductions)
            vr_rows = [jnp.sum(row(i) * u, axis=-1, keepdims=True) for i in range(d)]
            v_n2 = vr_rows[0] * vr_rows[0]
            for i in range(1, d):
                v_n2 = v_n2 + vr_rows[i] * vr_rows[i]                      # (TB, 1)
            inv_vn = lax.rsqrt(jnp.maximum(v_n2, eps2))                    # (TB, 1)
            v_rows = [vr * inv_vn for vr in vr_rows]
        # s = u^T X^T v = (X u) . v = ||X u||^2 / max(||X u||, eps)   (norm reuse)
        s = v_n2 * inv_vn                                                  # (TB, 1)

        if alpha == 0.5:
            s_a = jnp.sqrt(s)
            s_1ma = s_a
        else:
            s_a = jnp.power(s, jnp.float32(alpha))
            s_1ma = jnp.power(s, jnp.float32(1.0 - alpha))

        if step < sv_num - 1:
            # non-final singular value: accumulate y and deflate X explicitly
            new_y, new_x = [], []
            for i in range(d):
                uvi = v_rows[i] * u                                        # (TB, N)
                yi = s_a * uvi
                new_y.append(yi if y_rows is None else y_rows[i] + yi)
                new_x.append(row(i) - s * uvi)
            y_rows, x_rows = new_y, new_x
        else:
            # final singular value: fuse accumulation + deflation + remainder:
            #   y = y_acc + (s^a - s*inv) * v u^T + x * inv
            inv = 1.0 / (s_1ma + jnp.float32(_REM_EPS))                    # (TB, 1)
            coef = s_a - s * inv                                           # (TB, 1)
            # group rows so each store chunk spans a multiple of 128 lanes
            if N % 128 == 0:
                group = 1
            elif 128 % N == 0 and d % (128 // N) == 0:
                group = 128 // N
            else:
                group = 1          # fall back to (masked) per-row stores
            for i0 in range(0, d, group):
                parts = []
                for j in range(group):
                    i = i0 + j
                    r = (coef * v_rows[i]) * u + inv * row(i)
                    if y_rows is not None:
                        r = r + y_rows[i]
                    parts.append(r)
                chunk = parts[0] if group == 1 else jnp.concatenate(parts, axis=-1)
                o_ref[:, i0 * N:(i0 + group) * N] = chunk.astype(o_ref.dtype)


def _pick_block_batch(batch, max_block=256):
    """Largest multiple-of-8 divisor of `batch` <= max_block (prefer >= 2 grid steps)."""
    cands = [t for t in range(8, min(batch, max_block) + 1, 8) if batch % t == 0]
    if not cands:
        return batch                        # single block covering the whole batch
    tb = cands[-1]
    if batch // tb < 2:                     # keep >= 2 grid steps so the 'parallel'
        two = [t for t in cands if batch // t >= 2]   # axis can shard across cores
        if two:
            tb = two[-1]
    return tb


def svpn_forward(x, weight, *, alpha=0.5, iter_num=1, sv_num=1, block_batch=256):
    """x: (B, d, N) float, weight: (d,) float -> (B, d*N)   (vec='full')."""
    B, d, N = x.shape
    assert iter_num >= 1 and sv_num >= 1
    # Flatten (d, N) onto the lane axis once at the XLA level so the kernel works
    # on a lane-dense (TB, d*N) block with batch on sublanes (dense, 128-aligned
    # loads/stores, no in-kernel transposes).  If upstream already provides
    # channel-flattened activations this reshape is free.
    x_flat = x.reshape(B, d * N)
    w2 = weight.reshape(1, d).astype(jnp.float32)

    tb = _pick_block_batch(B, block_batch)
    grid = (B // tb,)

    kernel = functools.partial(
        _svpn_kernel, alpha=alpha, iter_num=iter_num, sv_num=sv_num, d=d, N=N)

    flops = int(B * d * N * (6 * iter_num + 4) * sv_num)
    transcendentals = int(B * (2 * iter_num + 1) * sv_num)
    bytes_accessed = int(2 * x_flat.size * x_flat.dtype.itemsize + d * 4)

    return pl.pallas_call(
        kernel,
        out_shape=jax.ShapeDtypeStruct((B, d * N), x.dtype),
        grid_spec=pltpu.PrefetchScalarGridSpec(
            num_scalar_prefetch=0,
            grid=grid,
            in_specs=[
                pl.BlockSpec((1, d), lambda b: (0, 0)),          # weight (shared)
                pl.BlockSpec((tb, d * N), lambda b: (b, 0)),     # x, TB rows / step
            ],
            out_specs=pl.BlockSpec((tb, d * N), lambda b: (b, 0)),
        ),
        compiler_params=pltpu.CompilerParams(
            dimension_semantics=("parallel",),
        ),
        cost_estimate=pl.CostEstimate(
            flops=flops,
            transcendentals=transcendentals,
            bytes_accessed=bytes_accessed,
        ),
    )(w2, x_flat)
    # TODO(synk): vec == 'triu' (Triuvec custom autograd Function) and the optional
    # self.regular post-module are not implemented; defaults use vec='full', regular=None.


def svpn_reference(x, weight, *, alpha=0.5, iter_num=1, sv_num=1):
    """Pure-JAX transcription of the torch forward (for correctness check)."""
    B, d, N = x.shape
    xt = jnp.transpose(x, (0, 2, 1))          # (B, N, d)
    y = jnp.zeros((B, N, d), dtype=jnp.float32)
    s = jnp.zeros((B, 1, 1), dtype=jnp.float32)
    for _ in range(sv_num):
        v = jnp.broadcast_to(weight.reshape(1, d, 1), (B, d, 1))
        for _ in range(iter_num):
            u = xt @ v                                         # (B, N, 1)
            u = u / jnp.maximum(jnp.linalg.norm(u, axis=1, keepdims=True), _NORM_EPS)
            v = jnp.transpose(xt, (0, 2, 1)) @ u               # (B, d, 1)
            v = v / jnp.maximum(jnp.linalg.norm(v, axis=1, keepdims=True), _NORM_EPS)
        s = jnp.transpose(u, (0, 2, 1)) @ xt @ v               # (B, 1, 1)
        y = y + (u * jnp.power(s, alpha)) @ jnp.transpose(v, (0, 2, 1))
        xt = xt - (u * s) @ jnp.transpose(v, (0, 2, 1))
    y = y + xt / (jnp.power(s, 1.0 - alpha) + _REM_EPS)
    y = jnp.transpose(y, (0, 2, 1))                            # (B, d, N)
    return y.reshape(B, -1)


if __name__ == "__main__":
    B, d, N = 16, 16, 64          # input_dim = (d, N) = (16, 64)
    key = jax.random.PRNGKey(0)
    kx, kw = jax.random.split(key)
    x = jax.random.normal(kx, (B, d, N), dtype=jnp.float32)
    weight = jax.random.normal(kw, (d,), dtype=jnp.float32)   # nn.Parameter(torch.randn(d))

    out = jax.block_until_ready(svpn_forward(x, weight))
    ref = jax.block_until_ready(svpn_reference(x, weight))
    assert out.shape == (B, d * N), out.shape
    np.testing.assert_allclose(np.asarray(out), np.asarray(ref), rtol=1e-4, atol=1e-4)

    print("KERNEL_OK")
</pallas_src>

<mosaic_0001>
module attributes {stable_mosaic.version = 11 : i64} {
  func.func @_svpn_kernel(%arg0: i32, %arg1: memref<1x16xf32, #tpu.memory_space<vmem>>, %arg2: memref<8x1024xf32, #tpu.memory_space<vmem>>, %arg3: memref<8x1024xf32, #tpu.memory_space<vmem>>) attributes {dimension_semantics = [#tpu.dimension_semantics<parallel>], iteration_bounds = array<i64: 2>, scalar_prefetch = 0 : i64, scratch_operands = 0 : i64, tpu.core_type = #tpu.core_type<tc>, window_params = [{pipeline_mode = #tpu.pipeline_mode<synchronous>, transform_indices = @transform_0, window_bounds = array<i64: 1, 16>}, {transform_indices = @transform_1, window_bounds = array<i64: 8, 1024>}, {transform_indices = @transform_2, window_bounds = array<i64: 8, 1024>}]} {
    %c0 = arith.constant 0 : index
    %c0_0 = arith.constant 0 : index
    %0 = vector.load %arg1[%c0, %c0_0] : memref<1x16xf32, #tpu.memory_space<vmem>>, vector<1x16xf32>
    %1 = vector.extract_strided_slice %0 {offsets = [0, 0], sizes = [1, 1], strides = [1, 1]} : vector<1x16xf32> to vector<1x1xf32>
    %2 = vector.extract_strided_slice %0 {offsets = [0, 1], sizes = [1, 1], strides = [1, 1]} : vector<1x16xf32> to vector<1x1xf32>
    %3 = vector.extract_strided_slice %0 {offsets = [0, 2], sizes = [1, 1], strides = [1, 1]} : vector<1x16xf32> to vector<1x1xf32>
    %4 = vector.extract_strided_slice %0 {offsets = [0, 3], sizes = [1, 1], strides = [1, 1]} : vector<1x16xf32> to vector<1x1xf32>
    %5 = vector.extract_strided_slice %0 {offsets = [0, 4], sizes = [1, 1], strides = [1, 1]} : vector<1x16xf32> to vector<1x1xf32>
    %6 = vector.extract_strided_slice %0 {offsets = [0, 5], sizes = [1, 1], strides = [1, 1]} : vector<1x16xf32> to vector<1x1xf32>
    %7 = vector.extract_strided_slice %0 {offsets = [0, 6], sizes = [1, 1], strides = [1, 1]} : vector<1x16xf32> to vector<1x1xf32>
    %8 = vector.extract_strided_slice %0 {offsets = [0, 7], sizes = [1, 1], strides = [1, 1]} : vector<1x16xf32> to vector<1x1xf32>
    %9 = vector.extract_strided_slice %0 {offsets = [0, 8], sizes = [1, 1], strides = [1, 1]} : vector<1x16xf32> to vector<1x1xf32>
    %10 = vector.extract_strided_slice %0 {offsets = [0, 9], sizes = [1, 1], strides = [1, 1]} : vector<1x16xf32> to vector<1x1xf32>
    %11 = vector.extract_strided_slice %0 {offsets = [0, 10], sizes = [1, 1], strides = [1, 1]} : vector<1x16xf32> to vector<1x1xf32>
    %12 = vector.extract_strided_slice %0 {offsets = [0, 11], sizes = [1, 1], strides = [1, 1]} : vector<1x16xf32> to vector<1x1xf32>
    %13 = vector.extract_strided_slice %0 {offsets = [0, 12], sizes = [1, 1], strides = [1, 1]} : vector<1x16xf32> to vector<1x1xf32>
    %14 = vector.extract_strided_slice %0 {offsets = [0, 13], sizes = [1, 1], strides = [1, 1]} : vector<1x16xf32> to vector<1x1xf32>
    %15 = vector.extract_strided_slice %0 {offsets = [0, 14], sizes = [1, 1], strides = [1, 1]} : vector<1x16xf32> to vector<1x1xf32>
    %16 = vector.extract_strided_slice %0 {offsets = [0, 15], sizes = [1, 1], strides = [1, 1]} : vector<1x16xf32> to vector<1x1xf32>
    %c0_1 = arith.constant 0 : index
    %c0_2 = arith.constant 0 : index
    %17 = vector.load %arg2[%c0_1, %c0_2] : memref<8x1024xf32, #tpu.memory_space<vmem>>, vector<8x64xf32>
    %18 = vector.broadcast %1 : vector<1x1xf32> to vector<8x64xf32>
    %19 = arith.mulf %17, %18 : vector<8x64xf32>
    %c0_3 = arith.constant 0 : index
    %c64 = arith.constant 64 : index
    %20 = vector.load %arg2[%c0_3, %c64] : memref<8x1024xf32, #tpu.memory_space<vmem>>, vector<8x64xf32>
    %21 = vector.broadcast %2 : vector<1x1xf32> to vector<8x64xf32>
    %22 = arith.mulf %20, %21 : vector<8x64xf32>
    %23 = arith.addf %19, %22 : vector<8x64xf32>
    %c0_4 = arith.constant 0 : index
    %c128 = arith.constant 128 : index
    %24 = vector.load %arg2[%c0_4, %c128] : memref<8x1024xf32, #tpu.memory_space<vmem>>, vector<8x64xf32>
    %25 = vector.broadcast %3 : vector<1x1xf32> to vector<8x64xf32>
    %26 = arith.mulf %24, %25 : vector<8x64xf32>
    %27 = arith.addf %23, %26 : vector<8x64xf32>
    %c0_5 = arith.constant 0 : index
    %c192 = arith.constant 192 : index
    %28 = vector.load %arg2[%c0_5, %c192] : memref<8x1024xf32, #tpu.memory_space<vmem>>, vector<8x64xf32>
    %29 = vector.broadcast %4 : vector<1x1xf32> to vector<8x64xf32>
    %30 = arith.mulf %28, %29 : vector<8x64xf32>
    %31 = arith.addf %27, %30 : vector<8x64xf32>
    %c0_6 = arith.constant 0 : index
    %c256 = arith.constant 256 : index
    %32 = vector.load %arg2[%c0_6, %c256] : memref<8x1024xf32, #tpu.memory_space<vmem>>, vector<8x64xf32>
    %33 = vector.broadcast %5 : vector<1x1xf32> to vector<8x64xf32>
    %34 = arith.mulf %32, %33 : vector<8x64xf32>
    %35 = arith.addf %31, %34 : vector<8x64xf32>
    %c0_7 = arith.constant 0 : index
    %c320 = arith.constant 320 : index
    %36 = vector.load %arg2[%c0_7, %c320] : memref<8x1024xf32, #tpu.memory_space<vmem>>, vector<8x64xf32>
    %37 = vector.broadcast %6 : vector<1x1xf32> to vector<8x64xf32>
    %38 = arith.mulf %36, %37 : vector<8x64xf32>
    %39 = arith.addf %35, %38 : vector<8x64xf32>
    %c0_8 = arith.constant 0 : index
    %c384 = arith.constant 384 : index
    %40 = vector.load %arg2[%c0_8, %c384] : memref<8x1024xf32, #tpu.memory_space<vmem>>, vector<8x64xf32>
    %41 = vector.broadcast %7 : vector<1x1xf32> to vector<8x64xf32>
    %42 = arith.mulf %40, %41 : vector<8x64xf32>
    %43 = arith.addf %39, %42 : vector<8x64xf32>
    %c0_9 = arith.constant 0 : index
    %c448 = arith.constant 448 : index
    %44 = vector.load %arg2[%c0_9, %c448] : memref<8x1024xf32, #tpu.memory_space<vmem>>, vector<8x64xf32>
    %45 = vector.broadcast %8 : vector<1x1xf32> to vector<8x64xf32>
    %46 = arith.mulf %44, %45 : vector<8x64xf32>
    %47 = arith.addf %43, %46 : vector<8x64xf32>
    %c0_10 = arith.constant 0 : index
    %c512 = arith.constant 512 : index
    %48 = vector.load %arg2[%c0_10, %c512] : memref<8x1024xf32, #tpu.memory_space<vmem>>, vector<8x64xf32>
    %49 = vector.broadcast %9 : vector<1x1xf32> to vector<8x64xf32>
    %50 = arith.mulf %48, %49 : vector<8x64xf32>
    %51 = arith.addf %47, %50 : vector<8x64xf32>
    %c0_11 = arith.constant 0 : index
    %c576 = arith.constant 576 : index
    %52 = vector.load %arg2[%c0_11, %c576] : memref<8x1024xf32, #tpu.memory_space<vmem>>, vector<8x64xf32>
    %53 = vector.broadcast %10 : vector<1x1xf32> to vector<8x64xf32>
    %54 = arith.mulf %52, %53 : vector<8x64xf32>
    %55 = arith.addf %51, %54 : vector<8x64xf32>
    %c0_12 = arith.constant 0 : index
    %c640 = arith.constant 640 : index
    %56 = vector.load %arg2[%c0_12, %c640] : memref<8x1024xf32, #tpu.memory_space<vmem>>, vector<8x64xf32>
    %57 = vector.broadcast %11 : vector<1x1xf32> to vector<8x64xf32>
    %58 = arith.mulf %56, %57 : vector<8x64xf32>
    %59 = arith.addf %55, %58 : vector<8x64xf32>
    %c0_13 = arith.constant 0 : index
    %c704 = arith.constant 704 : index
    %60 = vector.load %arg2[%c0_13, %c704] : memref<8x1024xf32, #tpu.memory_space<vmem>>, vector<8x64xf32>
    %61 = vector.broadcast %12 : vector<1x1xf32> to vector<8x64xf32>
    %62 = arith.mulf %60, %61 : vector<8x64xf32>
    %63 = arith.addf %59, %62 : vector<8x64xf32>
    %c0_14 = arith.constant 0 : index
    %c768 = arith.constant 768 : index
    %64 = vector.load %arg2[%c0_14, %c768] : memref<8x1024xf32, #tpu.memory_space<vmem>>, vector<8x64xf32>
    %65 = vector.broadcast %13 : vector<1x1xf32> to vector<8x64xf32>
    %66 = arith.mulf %64, %65 : vector<8x64xf32>
    %67 = arith.addf %63, %66 : vector<8x64xf32>
    %c0_15 = arith.constant 0 : index
    %c832 = arith.constant 832 : index
    %68 = vector.load %arg2[%c0_15, %c832] : memref<8x1024xf32, #tpu.memory_space<vmem>>, vector<8x64xf32>
    %69 = vector.broadcast %14 : vector<1x1xf32> to vector<8x64xf32>
    %70 = arith.mulf %68, %69 : vector<8x64xf32>
    %71 = arith.addf %67, %70 : vector<8x64xf32>
    %c0_16 = arith.constant 0 : index
    %c896 = arith.constant 896 : index
    %72 = vector.load %arg2[%c0_16, %c896] : memref<8x1024xf32, #tpu.memory_space<vmem>>, vector<8x64xf32>
    %73 = vector.broadcast %15 : vector<1x1xf32> to vector<8x64xf32>
    %74 = arith.mulf %72, %73 : vector<8x64xf32>
    %75 = arith.addf %71, %74 : vector<8x64xf32>
    %c0_17 = arith.constant 0 : index
    %c960 = arith.constant 960 : index
    %76 = vector.load %arg2[%c0_17, %c960] : memref<8x1024xf32, #tpu.memory_space<vmem>>, vector<8x64xf32>
    %77 = vector.broadcast %16 : vector<1x1xf32> to vector<8x64xf32>
    %78 = arith.mulf %76, %77 : vector<8x64xf32>
    %79 = arith.addf %75, %78 : vector<8x64xf32>
    %80 = arith.mulf %79, %79 : vector<8x64xf32>
    %cst = arith.constant dense<0.000000e+00> : vector<8xf32>
    %81 = vector.multi_reduction <add>, %80, %cst [1] : vector<8x64xf32> to vector<8xf32>
    %82 = vector.shape_cast %81 : vector<8xf32> to vector<8x1xf32>
    %cst_18 = arith.constant 1.000000e-24 : f32
    %83 = vector.broadcast %cst_18 : f32 to vector<8x1xf32>
    %84 = arith.maximumf %82, %83 : vector<8x1xf32>
    %85 = math.rsqrt %84 : vector<8x1xf32>
    %86 = vector.broadcast %85 : vector<8x1xf32> to vector<8x64xf32>
    %87 = arith.mulf %79, %86 : vector<8x64xf32>
    %c0_19 = arith.constant 0 : index
    %c0_20 = arith.constant 0 : index
    %88 = vector.load %arg2[%c0_19, %c0_20] : memref<8x1024xf32, #tpu.memory_space<vmem>>, vector<8x64xf32>
    %89 = arith.mulf %88, %87 : vector<8x64xf32>
    %cst_21 = arith.constant dense<0.000000e+00> : vector<8xf32>
    %90 = vector.multi_reduction <add>, %89, %cst_21 [1] : vector<8x64xf32> to vector<8xf32>
    %91 = vector.shape_cast %90 : vector<8xf32> to vector<8x1xf32>
    %c0_22 = arith.constant 0 : index
    %c64_23 = arith.constant 64 : index
    %92 = vector.load %arg2[%c0_22, %c64_23] : memref<8x1024xf32, #tpu.memory_space<vmem>>, vector<8x64xf32>
    %93 = arith.mulf %92, %87 : vector<8x64xf32>
    %cst_24 = arith.constant dense<0.000000e+00> : vector<8xf32>
    %94 = vector.multi_reduction <add>, %93, %cst_24 [1] : vector<8x64xf32> to vector<8xf32>
    %95 = vector.shape_cast %94 : vector<8xf32> to vector<8x1xf32>
    %c0_25 = arith.constant 0 : index
    %c128_26 = arith.constant 128 : index
    %96 = vector.load %arg2[%c0_25, %c128_26] : memref<8x1024xf32, #tpu.memory_space<vmem>>, vector<8x64xf32>
    %97 = arith.mulf %96, %87 : vector<8x64xf32>
    %cst_27 = arith.constant dense<0.000000e+00> : vector<8xf32>
    %98 = vector.multi_reduction <add>, %97, %cst_27 [1] : vector<8x64xf32> to vector<8xf32>
    %99 = vector.shape_cast %98 : vector<8xf32> to vector<8x1xf32>
    %c0_28 = arith.constant 0 : index
    %c192_29 = arith.constant 192 : index
    %100 = vector.load %arg2[%c0_28, %c192_29] : memref<8x1024xf32, #tpu.memory_space<vmem>>, vector<8x64xf32>
    %101 = arith.mulf %100, %87 : vector<8x64xf32>
    %cst_30 = arith.constant dense<0.000000e+00> : vector<8xf32>
    %102 = vector.multi_reduction <add>, %101, %cst_30 [1] : vector<8x64xf32> to vector<8xf32>
    %103 = vector.shape_cast %102 : vector<8xf32> to vector<8x1xf32>
    %c0_31 = arith.constant 0 : index
    %c256_32 = arith.constant 256 : index
    %104 = vector.load %arg2[%c0_31, %c256_32] : memref<8x1024xf32, #tpu.memory_space<vmem>>, vector<8x64xf32>
    %105 = arith.mulf %104, %87 : vector<8x64xf32>
    %cst_33 = arith.constant dense<0.000000e+00> : vector<8xf32>
    %106 = vector.multi_reduction <add>, %105, %cst_33 [1] : vector<8x64xf32> to vector<8xf32>
    %107 = vector.shape_cast %106 : vector<8xf32> to vector<8x1xf32>
    %c0_34 = arith.constant 0 : index
    %c320_35 = arith.constant 320 : index
    %108 = vector.load %arg2[%c0_34, %c320_35] : memref<8x1024xf32, #tpu.memory_space<vmem>>, vector<8x64xf32>
    %109 = arith.mulf %108, %87 : vector<8x64xf32>
    %cst_36 = arith.constant dense<0.000000e+00> : vector<8xf32>
    %110 = vector.multi_reduction <add>, %109, %cst_36 [1] : vector<8x64xf32> to vector<8xf32>
    %111 = vector.shape_cast %110 : vector<8xf32> to vector<8x1xf32>
    %c0_37 = arith.constant 0 : index
    %c384_38 = arith.constant 384 : index
    %112 = vector.load %arg2[%c0_37, %c384_38] : memref<8x1024xf32, #tpu.memory_space<vmem>>, vector<8x64xf32>
    %113 = arith.mulf %112, %87 : vector<8x64xf32>
    %cst_39 = arith.constant dense<0.000000e+00> : vector<8xf32>
    %114 = vector.multi_reduction <add>, %113, %cst_39 [1] : vector<8x64xf32> to vector<8xf32>
    %115 = vector.shape_cast %114 : vector<8xf32> to vector<8x1xf32>
    %c0_40 = arith.constant 0 : index
    %c448_41 = arith.constant 448 : index
    %116 = vector.load %arg2[%c0_40, %c448_41] : memref<8x1024xf32, #tpu.memory_space<vmem>>, vector<8x64xf32>
    %117 = arith.mulf %116, %87 : vector<8x64xf32>
    %cst_42 = arith.constant dense<0.000000e+00> : vector<8xf32>
    %118 = vector.multi_reduction <add>, %117, %cst_42 [1] : vector<8x64xf32> to vector<8xf32>
    %119 = vector.shape_cast %118 : vector<8xf32> to vector<8x1xf32>
    %c0_43 = arith.constant 0 : index
    %c512_44 = arith.constant 512 : index
    %120 = vector.load %arg2[%c0_43, %c512_44] : memref<8x1024xf32, #tpu.memory_space<vmem>>, vector<8x64xf32>
    %121 = arith.mulf %120, %87 : vector<8x64xf32>
    %cst_45 = arith.constant dense<0.000000e+00> : vector<8xf32>
    %122 = vector.multi_reduction <add>, %121, %cst_45 [1] : vector<8x64xf32> to vector<8xf32>
    %123 = vector.shape_cast %122 : vector<8xf32> to vector<8x1xf32>
    %c0_46 = arith.constant 0 : index
    %c576_47 = arith.constant 576 : index
    %124 = vector.load %arg2[%c0_46, %c576_47] : memref<8x1024xf32, #tpu.memory_space<vmem>>, vector<8x64xf32>
    %125 = arith.mulf %124, %87 : vector<8x64xf32>
    %cst_48 = arith.constant dense<0.000000e+00> : vector<8xf32>
    %126 = vector.multi_reduction <add>, %125, %cst_48 [1] : vector<8x64xf32> to vector<8xf32>
    %127 = vector.shape_cast %126 : vector<8xf32> to vector<8x1xf32>
    %c0_49 = arith.constant 0 : index
    %c640_50 = arith.constant 640 : index
    %128 = vector.load %arg2[%c0_49, %c640_50] : memref<8x1024xf32, #tpu.memory_space<vmem>>, vector<8x64xf32>
    %129 = arith.mulf %128, %87 : vector<8x64xf32>
    %cst_51 = arith.constant dense<0.000000e+00> : vector<8xf32>
    %130 = vector.multi_reduction <add>, %129, %cst_51 [1] : vector<8x64xf32> to vector<8xf32>
    %131 = vector.shape_cast %130 : vector<8xf32> to vector<8x1xf32>
    %c0_52 = arith.constant 0 : index
    %c704_53 = arith.constant 704 : index
    %132 = vector.load %arg2[%c0_52, %c704_53] : memref<8x1024xf32, #tpu.memory_space<vmem>>, vector<8x64xf32>
    %133 = arith.mulf %132, %87 : vector<8x64xf32>
    %cst_54 = arith.constant dense<0.000000e+00> : vector<8xf32>
    %134 = vector.multi_reduction <add>, %133, %cst_54 [1] : vector<8x64xf32> to vector<8xf32>
    %135 = vector.shape_cast %134 : vector<8xf32> to vector<8x1xf32>
    %c0_55 = arith.constant 0 : index
    %c768_56 = arith.constant 768 : index
    %136 = vector.load %arg2[%c0_55, %c768_56] : memref<8x1024xf32, #tpu.memory_space<vmem>>, vector<8x64xf32>
    %137 = arith.mulf %136, %87 : vector<8x64xf32>
    %cst_57 = arith.constant dense<0.000000e+00> : vector<8xf32>
    %138 = vector.multi_reduction <add>, %137, %cst_57 [1] : vector<8x64xf32> to vector<8xf32>
    %139 = vector.shape_cast %138 : vector<8xf32> to vector<8x1xf32>
    %c0_58 = arith.constant 0 : index
    %c832_59 = arith.constant 832 : index
    %140 = vector.load %arg2[%c0_58, %c832_59] : memref<8x1024xf32, #tpu.memory_space<vmem>>, vector<8x64xf32>
    %141 = arith.mulf %140, %87 : vector<8x64xf32>
    %cst_60 = arith.constant dense<0.000000e+00> : vector<8xf32>
    %142 = vector.multi_reduction <add>, %141, %cst_60 [1] : vector<8x64xf32> to vector<8xf32>
    %143 = vector.shape_cast %142 : vector<8xf32> to vector<8x1xf32>
    %c0_61 = arith.constant 0 : index
    %c896_62 = arith.constant 896 : index
    %144 = vector.load %arg2[%c0_61, %c896_62] : memref<8x1024xf32, #tpu.memory_space<vmem>>, vector<8x64xf32>
    %145 = arith.mulf %144, %87 : vector<8x64xf32>
    %cst_63 = arith.constant dense<0.000000e+00> : vector<8xf32>
    %146 = vector.multi_reduction <add>, %145, %cst_63 [1] : vector<8x64xf32> to vector<8xf32>
    %147 = vector.shape_cast %146 : vector<8xf32> to vector<8x1xf32>
    %c0_64 = arith.constant 0 : index
    %c960_65 = arith.constant 960 : index
    %148 = vector.load %arg2[%c0_64, %c960_65] : memref<8x1024xf32, #tpu.memory_space<vmem>>, vector<8x64xf32>
    %149 = arith.mulf %148, %87 : vector<8x64xf32>
    %cst_66 = arith.constant dense<0.000000e+00> : vector<8xf32>
    %150 = vector.multi_reduction <add>, %149, %cst_66 [1] : vector<8x64xf32> to vector<8xf32>
    %151 = vector.shape_cast %150 : vector<8xf32> to vector<8x1xf32>
    %152 = arith.mulf %91, %91 : vector<8x1xf32>
    %153 = arith.mulf %95, %95 : vector<8x1xf32>
    %154 = arith.addf %152, %153 : vector<8x1xf32>
    %155 = arith.mulf %99, %99 : vector<8x1xf32>
    %156 = arith.addf %154, %155 : vector<8x1xf32>
    %157 = arith.mulf %103, %103 : vector<8x1xf32>
    %158 = arith.addf %156, %157 : vector<8x1xf32>
    %159 = arith.mulf %107, %107 : vector<8x1xf32>
    %160 = arith.addf %158, %159 : vector<8x1xf32>
    %161 = arith.mulf %111, %111 : vector<8x1xf32>
    %162 = arith.addf %160, %161 : vector<8x1xf32>
    %163 = arith.mulf %115, %115 : vector<8x1xf32>
    %164 = arith.addf %162, %163 : vector<8x1xf32>
    %165 = arith.mulf %119, %119 : vector<8x1xf32>
    %166 = arith.addf %164, %165 : vector<8x1xf32>
    %167 = arith.mulf %123, %123 : vector<8x1xf32>
    %168 = arith.addf %166, %167 : vector<8x1xf32>
    %169 = arith.mulf %127, %127 : vector<8x1xf32>
    %170 = arith.addf %168, %169 : vector<8x1xf32>
    %171 = arith.mulf %131, %131 : vector<8x1xf32>
    %172 = arith.addf %170, %171 : vector<8x1xf32>
    %173 = arith.mulf %135, %135 : vector<8x1xf32>
    %174 = arith.addf %172, %173 : vector<8x1xf32>
    %175 = arith.mulf %139, %139 : vector<8x1xf32>
    %176 = arith.addf %174, %175 : vector<8x1xf32>
    %177 = arith.mulf %143, %143 : vector<8x1xf32>
    %178 = arith.addf %176, %177 : vector<8x1xf32>
    %179 = arith.mulf %147, %147 : vector<8x1xf32>
    %180 = arith.addf %178, %179 : vector<8x1xf32>
    %181 = arith.mulf %151, %151 : vector<8x1xf32>
    %182 = arith.addf %180, %181 : vector<8x1xf32>
    %cst_67 = arith.constant 1.000000e-24 : f32
    %183 = vector.broadcast %cst_67 : f32 to vector<8x1xf32>
    %184 = arith.maximumf %182, %183 : vector<8x1xf32>
    %185 = math.rsqrt %184 : vector<8x1xf32>
    %186 = arith.mulf %91, %185 : vector<8x1xf32>
    %187 = arith.mulf %95, %185 : vector<8x1xf32>
    %188 = arith.mulf %99, %185 : vector<8x1xf32>
    %189 = arith.mulf %103, %185 : vector<8x1xf32>
    %190 = arith.mulf %107, %185 : vector<8x1xf32>
    %191 = arith.mulf %111, %185 : vector<8x1xf32>
    %192 = arith.mulf %115, %185 : vector<8x1xf32>
    %193 = arith.mulf %119, %185 : vector<8x1xf32>
    %194 = arith.mulf %123, %185 : vector<8x1xf32>
    %195 = arith.mulf %127, %185 : vector<8x1xf32>
    %196 = arith.mulf %131, %185 : vector<8x1xf32>
    %197 = arith.mulf %135, %185 : vector<8x1xf32>
    %198 = arith.mulf %139, %185 : vector<8x1xf32>
    %199 = arith.mulf %143, %185 : vector<8x1xf32>
    %200 = arith.mulf %147, %185 : vector<8x1xf32>
    %201 = arith.mulf %151, %185 : vector<8x1xf32>
    %202 = arith.mulf %182, %185 : vector<8x1xf32>
    %203 = math.sqrt %202 : vector<8x1xf32>
    %cst_68 = arith.constant 9.99999974E-6 : f32
    %204 = vector.broadcast %cst_68 : f32 to vector<8x1xf32>
    %205 = arith.addf %203, %204 : vector<8x1xf32>
    %cst_69 = arith.constant 1.000000e+00 : f32
    %206 = vector.broadcast %cst_69 : f32 to vector<8x1xf32>
    %207 = arith.divf %206, %205 : vector<8x1xf32>
    %208 = arith.mulf %202, %207 : vector<8x1xf32>
    %209 = arith.subf %203, %208 : vector<8x1xf32>
    %210 = arith.mulf %209, %186 : vector<8x1xf32>
    %211 = vector.broadcast %210 : vector<8x1xf32> to vector<8x64xf32>
    %212 = arith.mulf %211, %87 : vector<8x64xf32>
    %c0_70 = arith.constant 0 : index
    %c0_71 = arith.constant 0 : index
    %213 = vector.load %arg2[%c0_70, %c0_71] : memref<8x1024xf32, #tpu.memory_space<vmem>>, vector<8x64xf32>
    %214 = vector.broadcast %207 : vector<8x1xf32> to vector<8x64xf32>
    %215 = arith.mulf %214, %213 : vector<8x64xf32>
    %216 = arith.addf %212, %215 : vector<8x64xf32>
    %217 = arith.mulf %209, %187 : vector<8x1xf32>
    %218 = vector.broadcast %217 : vector<8x1xf32> to vector<8x64xf32>
    %219 = arith.mulf %218, %87 : vector<8x64xf32>
    %c0_72 = arith.constant 0 : index
    %c64_73 = arith.constant 64 : index
    %220 = vector.load %arg2[%c0_72, %c64_73] : memref<8x1024xf32, #tpu.memory_space<vmem>>, vector<8x64xf32>
    %221 = vector.broadcast %207 : vector<8x1xf32> to vector<8x64xf32>
    %222 = arith.mulf %221, %220 : vector<8x64xf32>
    %223 = arith.addf %219, %222 : vector<8x64xf32>
    %224 = tpu.concatenate %216, %223 in 1 : vector<8x64xf32>, vector<8x64xf32> -> vector<8x128xf32>
    %c0_74 = arith.constant 0 : index
    %c0_75 = arith.constant 0 : index
    %225 = vector.load %arg3[%c0_74, %c0_75] : memref<8x1024xf32, #tpu.memory_space<vmem>>, vector<8x128xf32>
    tpu.vector_store %arg3[%c0_74, %c0_75], %224 {strides = array<i32>} : memref<8x1024xf32, #tpu.memory_space<vmem>>, vector<8x128xf32>,
    %226 = arith.mulf %209, %188 : vector<8x1xf32>
    %227 = vector.broadcast %226 : vector<8x1xf32> to vector<8x64xf32>
    %228 = arith.mulf %227, %87 : vector<8x64xf32>
    %c0_76 = arith.constant 0 : index
    %c128_77 = arith.constant 128 : index
    %229 = vector.load %arg2[%c0_76, %c128_77] : memref<8x1024xf32, #tpu.memory_space<vmem>>, vector<8x64xf32>
    %230 = vector.broadcast %207 : vector<8x1xf32> to vector<8x64xf32>
    %231 = arith.mulf %230, %229 : vector<8x64xf32>
    %232 = arith.addf %228, %231 : vector<8x64xf32>
    %233 = arith.mulf %209, %189 : vector<8x1xf32>
    %234 = vector.broadcast %233 : vector<8x1xf32> to vector<8x64xf32>
    %235 = arith.mulf %234, %87 : vector<8x64xf32>
    %c0_78 = arith.constant 0 : index
    %c192_79 = arith.constant 192 : index
    %236 = vector.load %arg2[%c0_78, %c192_79] : memref<8x1024xf32, #tpu.memory_space<vmem>>, vector<8x64xf32>
    %237 = vector.broadcast %207 : vector<8x1xf32> to vector<8x64xf32>
    %238 = arith.mulf %237, %236 : vector<8x64xf32>
    %239 = arith.addf %235, %238 : vector<8x64xf32>
    %240 = tpu.concatenate %232, %239 in 1 : vector<8x64xf32>, vector<8x64xf32> -> vector<8x128xf32>
    %c0_80 = arith.constant 0 : index
    %c128_81 = arith.constant 128 : index
    %241 = vector.load %arg3[%c0_80, %c128_81] : memref<8x1024xf32, #tpu.memory_space<vmem>>, vector<8x128xf32>
    tpu.vector_store %arg3[%c0_80, %c128_81], %240 {strides = array<i32>} : memref<8x1024xf32, #tpu.memory_space<vmem>>, vector<8x128xf32>,
    %242 = arith.mulf %209, %190 : vector<8x1xf32>
    %243 = vector.broadcast %242 : vector<8x1xf32> to vector<8x64xf32>
    %244 = arith.mulf %243, %87 : vector<8x64xf32>
    %c0_82 = arith.constant 0 : index
    %c256_83 = arith.constant 256 : index
    %245 = vector.load %arg2[%c0_82, %c256_83] : memref<8x1024xf32, #tpu.memory_space<vmem>>, vector<8x64xf32>
    %246 = vector.broadcast %207 : vector<8x1xf32> to vector<8x64xf32>
    %247 = arith.mulf %246, %245 : vector<8x64xf32>
    %248 = arith.addf %244, %247 : vector<8x64xf32>
    %249 = arith.mulf %209, %191 : vector<8x1xf32>
    %250 = vector.broadcast %249 : vector<8x1xf32> to vector<8x64xf32>
    %251 = arith.mulf %250, %87 : vector<8x64xf32>
    %c0_84 = arith.constant 0 : index
    %c320_85 = arith.constant 320 : index
    %252 = vector.load %arg2[%c0_84, %c320_85] : memref<8x1024xf32, #tpu.memory_space<vmem>>, vector<8x64xf32>
    %253 = vector.broadcast %207 : vector<8x1xf32> to vector<8x64xf32>
    %254 = arith.mulf %253, %252 : vector<8x64xf32>
    %255 = arith.addf %251, %254 : vector<8x64xf32>
    %256 = tpu.concatenate %248, %255 in 1 : vector<8x64xf32>, vector<8x64xf32> -> vector<8x128xf32>
    %c0_86 = arith.constant 0 : index
    %c256_87 = arith.constant 256 : index
    %257 = vector.load %arg3[%c0_86, %c256_87] : memref<8x1024xf32, #tpu.memory_space<vmem>>, vector<8x128xf32>
    tpu.vector_store %arg3[%c0_86, %c256_87], %256 {strides = array<i32>} : memref<8x1024xf32, #tpu.memory_space<vmem>>, vector<8x128xf32>,
    %258 = arith.mulf %209, %192 : vector<8x1xf32>
    %259 = vector.broadcast %258 : vector<8x1xf32> to vector<8x64xf32>
    %260 = arith.mulf %259, %87 : vector<8x64xf32>
    %c0_88 = arith.constant 0 : index
    %c384_89 = arith.constant 384 : index
    %261 = vector.load %arg2[%c0_88, %c384_89] : memref<8x1024xf32, #tpu.memory_space<vmem>>, vector<8x64xf32>
    %262 = vector.broadcast %207 : vector<8x1xf32> to vector<8x64xf32>
    %263 = arith.mulf %262, %261 : vector<8x64xf32>
    %264 = arith.addf %260, %263 : vector<8x64xf32>
    %265 = arith.mulf %209, %193 : vector<8x1xf32>
    %266 = vector.broadcast %265 : vector<8x1xf32> to vector<8x64xf32>
    %267 = arith.mulf %266, %87 : vector<8x64xf32>
    %c0_90 = arith.constant 0 : index
    %c448_91 = arith.constant 448 : index
    %268 = vector.load %arg2[%c0_90, %c448_91] : memref<8x1024xf32, #tpu.memory_space<vmem>>, vector<8x64xf32>
    %269 = vector.broadcast %207 : vector<8x1xf32> to vector<8x64xf32>
    %270 = arith.mulf %269, %268 : vector<8x64xf32>
    %271 = arith.addf %267, %270 : vector<8x64xf32>
    %272 = tpu.concatenate %264, %271 in 1 : vector<8x64xf32>, vector<8x64xf32> -> vector<8x128xf32>
    %c0_92 = arith.constant 0 : index
    %c384_93 = arith.constant 384 : index
    %273 = vector.load %arg3[%c0_92, %c384_93] : memref<8x1024xf32, #tpu.memory_space<vmem>>, vector<8x128xf32>
    tpu.vector_store %arg3[%c0_92, %c384_93], %272 {strides = array<i32>} : memref<8x1024xf32, #tpu.memory_space<vmem>>, vector<8x128xf32>,
    %274 = arith.mulf %209, %194 : vector<8x1xf32>
    %275 = vector.broadcast %274 : vector<8x1xf32> to vector<8x64xf32>
    %276 = arith.mulf %275, %87 : vector<8x64xf32>
    %c0_94 = arith.constant 0 : index
    %c512_95 = arith.constant 512 : index
    %277 = vector.load %arg2[%c0_94, %c512_95] : memref<8x1024xf32, #tpu.memory_space<vmem>>, vector<8x64xf32>
    %278 = vector.broadcast %207 : vector<8x1xf32> to vector<8x64xf32>
    %279 = arith.mulf %278, %277 : vector<8x64xf32>
    %280 = arith.addf %276, %279 : vector<8x64xf32>
    %281 = arith.mulf %209, %195 : vector<8x1xf32>
    %282 = vector.broadcast %281 : vector<8x1xf32> to vector<8x64xf32>
    %283 = arith.mulf %282, %87 : vector<8x64xf32>
    %c0_96 = arith.constant 0 : index
    %c576_97 = arith.constant 576 : index
    %284 = vector.load %arg2[%c0_96, %c576_97] : memref<8x1024xf32, #tpu.memory_space<vmem>>, vector<8x64xf32>
    %285 = vector.broadcast %207 : vector<8x1xf32> to vector<8x64xf32>
    %286 = arith.mulf %285, %284 : vector<8x64xf32>
    %287 = arith.addf %283, %286 : vector<8x64xf32>
    %288 = tpu.concatenate %280, %287 in 1 : vector<8x64xf32>, vector<8x64xf32> -> vector<8x128xf32>
    %c0_98 = arith.constant 0 : index
    %c512_99 = arith.constant 512 : index
    %289 = vector.load %arg3[%c0_98, %c512_99] : memref<8x1024xf32, #tpu.memory_space<vmem>>, vector<8x128xf32>
    tpu.vector_store %arg3[%c0_98, %c512_99], %288 {strides = array<i32>} : memref<8x1024xf32, #tpu.memory_space<vmem>>, vector<8x128xf32>,
    %290 = arith.mulf %209, %196 : vector<8x1xf32>
    %291 = vector.broadcast %290 : vector<8x1xf32> to vector<8x64xf32>
    %292 = arith.mulf %291, %87 : vector<8x64xf32>
    %c0_100 = arith.constant 0 : index
    %c640_101 = arith.constant 640 : index
    %293 = vector.load %arg2[%c0_100, %c640_101] : memref<8x1024xf32, #tpu.memory_space<vmem>>, vector<8x64xf32>
    %294 = vector.broadcast %207 : vector<8x1xf32> to vector<8x64xf32>
    %295 = arith.mulf %294, %293 : vector<8x64xf32>
    %296 = arith.addf %292, %295 : vector<8x64xf32>
    %297 = arith.mulf %209, %197 : vector<8x1xf32>
    %298 = vector.broadcast %297 : vector<8x1xf32> to vector<8x64xf32>
    %299 = arith.mulf %298, %87 : vector<8x64xf32>
    %c0_102 = arith.constant 0 : index
    %c704_103 = arith.constant 704 : index
    %300 = vector.load %arg2[%c0_102, %c704_103] : memref<8x1024xf32, #tpu.memory_space<vmem>>, vector<8x64xf32>
    %301 = vector.broadcast %207 : vector<8x1xf32> to vector<8x64xf32>
    %302 = arith.mulf %301, %300 : vector<8x64xf32>
    %303 = arith.addf %299, %302 : vector<8x64xf32>
    %304 = tpu.concatenate %296, %303 in 1 : vector<8x64xf32>, vector<8x64xf32> -> vector<8x128xf32>
    %c0_104 = arith.constant 0 : index
    %c640_105 = arith.constant 640 : index
    %305 = vector.load %arg3[%c0_104, %c640_105] : memref<8x1024xf32, #tpu.memory_space<vmem>>, vector<8x128xf32>
    tpu.vector_store %arg3[%c0_104, %c640_105], %304 {strides = array<i32>} : memref<8x1024xf32, #tpu.memory_space<vmem>>, vector<8x128xf32>,
    %306 = arith.mulf %209, %198 : vector<8x1xf32>
    %307 = vector.broadcast %306 : vector<8x1xf32> to vector<8x64xf32>
    %308 = arith.mulf %307, %87 : vector<8x64xf32>
    %c0_106 = arith.constant 0 : index
    %c768_107 = arith.constant 768 : index
    %309 = vector.load %arg2[%c0_106, %c768_107] : memref<8x1024xf32, #tpu.memory_space<vmem>>, vector<8x64xf32>
    %310 = vector.broadcast %207 : vector<8x1xf32> to vector<8x64xf32>
    %311 = arith.mulf %310, %309 : vector<8x64xf32>
    %312 = arith.addf %308, %311 : vector<8x64xf32>
    %313 = arith.mulf %209, %199 : vector<8x1xf32>
    %314 = vector.broadcast %313 : vector<8x1xf32> to vector<8x64xf32>
    %315 = arith.mulf %314, %87 : vector<8x64xf32>
    %c0_108 = arith.constant 0 : index
    %c832_109 = arith.constant 832 : index
    %316 = vector.load %arg2[%c0_108, %c832_109] : memref<8x1024xf32, #tpu.memory_space<vmem>>, vector<8x64xf32>
    %317 = vector.broadcast %207 : vector<8x1xf32> to vector<8x64xf32>
    %318 = arith.mulf %317, %316 : vector<8x64xf32>
    %319 = arith.addf %315, %318 : vector<8x64xf32>
    %320 = tpu.concatenate %312, %319 in 1 : vector<8x64xf32>, vector<8x64xf32> -> vector<8x128xf32>
    %c0_110 = arith.constant 0 : index
    %c768_111 = arith.constant 768 : index
    %321 = vector.load %arg3[%c0_110, %c768_111] : memref<8x1024xf32, #tpu.memory_space<vmem>>, vector<8x128xf32>
    tpu.vector_store %arg3[%c0_110, %c768_111], %320 {strides = array<i32>} : memref<8x1024xf32, #tpu.memory_space<vmem>>, vector<8x128xf32>,
    %322 = arith.mulf %209, %200 : vector<8x1xf32>
    %323 = vector.broadcast %322 : vector<8x1xf32> to vector<8x64xf32>
    %324 = arith.mulf %323, %87 : vector<8x64xf32>
    %c0_112 = arith.constant 0 : index
    %c896_113 = arith.constant 896 : index
    %325 = vector.load %arg2[%c0_112, %c896_113] : memref<8x1024xf32, #tpu.memory_space<vmem>>, vector<8x64xf32>
    %326 = vector.broadcast %207 : vector<8x1xf32> to vector<8x64xf32>
    %327 = arith.mulf %326, %325 : vector<8x64xf32>
    %328 = arith.addf %324, %327 : vector<8x64xf32>
    %329 = arith.mulf %209, %201 : vector<8x1xf32>
    %330 = vector.broadcast %329 : vector<8x1xf32> to vector<8x64xf32>
    %331 = arith.mulf %330, %87 : vector<8x64xf32>
    %c0_114 = arith.constant 0 : index
    %c960_115 = arith.constant 960 : index
    %332 = vector.load %arg2[%c0_114, %c960_115] : memref<8x1024xf32, #tpu.memory_space<vmem>>, vector<8x64xf32>
    %333 = vector.broadcast %207 : vector<8x1xf32> to vector<8x64xf32>
    %334 = arith.mulf %333, %332 : vector<8x64xf32>
    %335 = arith.addf %331, %334 : vector<8x64xf32>
    %336 = tpu.concatenate %328, %335 in 1 : vector<8x64xf32>, vector<8x64xf32> -> vector<8x128xf32>
    %c0_116 = arith.constant 0 : index
    %c896_117 = arith.constant 896 : index
    %337 = vector.load %arg3[%c0_116, %c896_117] : memref<8x1024xf32, #tpu.memory_space<vmem>>, vector<8x128xf32>
    tpu.vector_store %arg3[%c0_116, %c896_117], %336 {strides = array<i32>} : memref<8x1024xf32, #tpu.memory_space<vmem>>, vector<8x128xf32>,
    return
  }
  func.func @transform_0(%arg0: i32) -> (i32, i32) {
    %c0_i32 = arith.constant 0 : i32
    %c0_i32_0 = arith.constant 0 : i32
    %c0_i32_1 = arith.constant 0 : i32
    return %c0_i32, %c0_i32_0 : i32, i32
  }
  func.func @transform_1(%arg0: i32) -> (i32, i32) {
    %c0_i32 = arith.constant 0 : i32
    %c0_i32_0 = arith.constant 0 : i32
    return %arg0, %c0_i32 : i32, i32
  }
  func.func @transform_2(%arg0: i32) -> (i32, i32) {
    %c0_i32 = arith.constant 0 : i32
    %c0_i32_0 = arith.constant 0 : i32
    return %arg0, %c0_i32 : i32, i32
  }
}

</mosaic_0001>

<llo_original>
// kernel: tpu_custom_call.1
$region0: #{tpu_custom_call.1}
  #allocation0 [shape = 'u32[]', space=smem, size = 0x4, offset = 0x4, fixed_abs, tag = 'smem constant byte address 0x4 - core index']
  #allocation1 [shape = 'u32[144,128]{1,0:T(1,128)}', space=vmem, size = 0x12000, scoped, tag = 'internal scratch']
  %s0 = inlined_call_operand.hbm [shape: f32[1,16], index: 0, kind: input, shape index: {}]
  %s1 = inlined_call_operand.hbm [shape: f32[16,1024], index: 1, kind: input, shape index: {}]
  %s2 = inlined_call_operand.hbm [shape: f32[16,1024], index: 2, kind: output, shape index: {}]
  %s3 = sld [smem:[#allocation0]]
  $region49: #{tpu_custom_call.1} parent=0
    _
  %s5 = ssub.s32 1, %s3
  %s6 = scalar_select 0, %s5, %s3
  $region1: #{tpu_custom_call.1} parent=0
    #allocation2 [shape = 'u8[512]{0}', space=vmem, size = 0x400, scoped, tag = 'input window, operand 0, single buffered']
    #allocation3 [shape = 's32[2]{0}', space=sflag, size = 0x8, scoped, tag = 'scoped memory for tpu_custom_call.1']
    #allocation4 [shape = 's32[2]{0}', space=sflag, size = 0x8, scoped, tag = 'scoped memory for tpu_custom_call.1']
    #allocation5 [shape = 'u8[65536]{0}', space=vmem, size = 0x10000, scoped, tag = 'input window, operand 1']
    #allocation6 [shape = 's32[2]{0}', space=sflag, size = 0x8, scoped, tag = 'scoped memory for tpu_custom_call.1']
    #allocation7 [shape = 'u8[65536]{0}', space=vmem, size = 0x10000, scoped, tag = 'output window, operand 0']
    %7 = vsyncpa [#allocation3], 0
    %8 = vsyncpa [#allocation6], 0
    %s9 = scalar_lea.sflag [#allocation6], 1
    %10 = vsyncpa %s9, 0
    %11 = vsyncpa [#allocation4], 0
    %s12 = scalar_lea.sflag [#allocation4], 1
    %13 = vsyncpa %s12, 0
    loop: start=0, step=1, limit=4
    $region2: #{tpu_custom_call.1} parent=1 // loop_pre_header
      _
    $region3: #{tpu_custom_call.1} parent=1 // loop_header
      %s15 = sphi 0, %s19
      %p16 = scmp.ge.s32.totalorder %s15, 4
      %s23 = sphi 0, %s23
      %s25 = sphi 0, %s23
      %s26 = sphi 0, %s25
      %s40 = sphi 0, %s26
      %s46 = sphi 0, %s48
      %s49 = sphi 0, %s46
      %s50 = sphi 0, %s49
      %s66 = sphi 0, %s50
      %s72 = sphi 0, %s74
      %s75 = sphi 0, %s72
      %s76 = sphi 0, %s75
      %s92 = sphi 0, %s76
    $region4: #{tpu_custom_call.1} parent=1 // loop_header_branch
      %18 = sbr.rel (%p16) target = $region8
    $region5: #{tpu_custom_call.1} parent=1 // loop_body
      %s20 = ssub.s32 %s15, 1
      %s21 = ssub.s32 %s15, 2
      %s22 = sadd.s32 %s15, 1
      %s24 = sadd.s32 %s23, 1
      %p27 = scmp.eq.s32.totalorder %s15, 1
      %p28 = scmp.ne.s32.totalorder %s23, %s25
      %p29 = scmp.eq.s32.totalorder %s15, 0
      %p30 = por %p28, %p29
      %p31 = scmp.ne.s32.totalorder %s23, %s25
      %p32 = scmp.eq.s32.totalorder %s20, 1
      %p33 = por %p31, %p32
      %p34 = scmp.ne.s32.totalorder %s25, %s26
      %p35 = scmp.eq.s32.totalorder %s20, 0
      %p36 = por %p34, %p35
      %p37 = scmp.ne.s32.totalorder %s25, %s26
      %p38 = scmp.eq.s32.totalorder %s21, 1
      %p39 = por %p37, %p38
      %p41 = scmp.ne.s32.totalorder %s26, %s40
      %p42 = scmp.eq.s32.totalorder %s21, 0
      %p43 = por %p41, %p42
      %s44 = ssub.s32 %s15, %s22
      %p45 = scmp.eq.s32.totalorder %s44, 0
      %s47 = sadd.s32 %s46, 1
      %s48 = scalar_select %p45, %s46, %s47
      %p51 = pneg %p45
      %p52 = scmp.eq.s32.totalorder %s15, 1
      %p53 = por %p51, %p52
      %p54 = scmp.ne.s32.totalorder %s46, %s49
      %p55 = scmp.eq.s32.totalorder %s15, 0
      %p56 = por %p54, %p55
      %p57 = scmp.ne.s32.totalorder %s46, %s49
      %p58 = scmp.eq.s32.totalorder %s20, 1
      %p59 = por %p57, %p58
      %p60 = scmp.ne.s32.totalorder %s49, %s50
      %p61 = scmp.eq.s32.totalorder %s20, 0
      %p62 = por %p60, %p61
      %p63 = scmp.ne.s32.totalorder %s49, %s50
      %p64 = scmp.eq.s32.totalorder %s21, 1
      %p65 = por %p63, %p64
      %p67 = scmp.ne.s32.totalorder %s50, %s66
      %p68 = scmp.eq.s32.totalorder %s21, 0
      %p69 = por %p67, %p68
      %s70 = ssub.s32 %s15, %s22
      %p71 = scmp.eq.s32.totalorder %s70, 0
      %s73 = sadd.s32 %s72, 1
      %s74 = scalar_select %p71, %s72, %s73
      %p77 = pneg %p71
      %p78 = scmp.eq.s32.totalorder %s15, 1
      %p79 = por %p77, %p78
      %p80 = scmp.ne.s32.totalorder %s72, %s75
      %p81 = scmp.eq.s32.totalorder %s15, 0
      %p82 = por %p80, %p81
      %p83 = scmp.ne.s32.totalorder %s72, %s75
      %p84 = scmp.eq.s32.totalorder %s20, 1
      %p85 = por %p83, %p84
      %p86 = scmp.ne.s32.totalorder %s75, %s76
      %p87 = scmp.eq.s32.totalorder %s20, 0
      %p88 = por %p86, %p87
      %p89 = scmp.ne.s32.totalorder %s75, %s76
      %p90 = scmp.eq.s32.totalorder %s21, 1
      %p91 = por %p89, %p90
      %p93 = scmp.ne.s32.totalorder %s76, %s92
      %p94 = scmp.eq.s32.totalorder %s21, 0
      %p95 = por %p93, %p94
      %p96 = scmp.le.s32.totalorder 1, %s15
      %p97 = scmp.lt.s32.totalorder %s15, 3
      %p98 = pnand %p96, %p97
      %p99 = pneg %p98
      // Predicated region
      $region9: #{tpu_custom_call.1} parent=5 // pred_check
        _
      $region10: #{tpu_custom_call.1} parent=5 // pred_check_branch
        %101 = sbr.rel (%p98) target = $region12
      $region11: #{tpu_custom_call.1} parent=5 // pred_region
        %s102 = ssub.s32 %s15, 1
        // Predicated region
        $region13: #{tpu_custom_call.1} parent=11 // pred_check
          %p103 = pneg %p36
        $region14: #{tpu_custom_call.1} parent=11 // pred_check_branch
          %105 = sbr.rel (%p103) target = $region16
        $region15: #{tpu_custom_call.1} parent=11 // pred_region
          %s107 = ssub.s32 16, 16
          %108 = vsyncadd [#allocation3], %s107
          %s110 = sshll.u32 [#allocation2], 4
          %s111 = int_to_ptr.vmem [resolvable:$true] %s110
          %113 = dma.hbm_to_vmem [thread:$0]  %s0, 16, %s111, [#allocation3]
        $region16: #{tpu_custom_call.1} parent=11 // pred_fallthru
          _
      $region12: #{tpu_custom_call.1} parent=5 // pred_fallthru
        _
      %p114 = scmp.lt.s32.totalorder %s15, 2
      // Predicated region
      $region17: #{tpu_custom_call.1} parent=5 // pred_check
        %p115 = pneg %p114
      $region18: #{tpu_custom_call.1} parent=5 // pred_check_branch
        %117 = sbr.rel (%p115) target = $region20
      $region19: #{tpu_custom_call.1} parent=5 // pred_region
        // Predicated region
        $region21: #{tpu_custom_call.1} parent=19 // pred_check
          %p118 = pneg %p56
        $region22: #{tpu_custom_call.1} parent=19 // pred_check_branch
          %120 = sbr.rel (%p118) target = $region24
        $region23: #{tpu_custom_call.1} parent=19 // pred_region
          %s121 = sand.u32 %s46, 1
          %s122 = scalar_lea.sflag [#allocation6], %s121
          %s123 = sand.u32 %s46, 1
          %s124 = smul.addr %s123, 64
          %s125 = scalar_lea.vmem [#allocation5], %s124
          %s127 = ssub.s32 1024, 1024
          %128 = vsyncadd %s122, %s127
          %s129 = smul.addr %s15, 8
          %s130 = smul.addr %s129, 128
          %s131 = scalar_lea.hbm %s1, %s130
          %s133 = sshll.u32 %s125, 4
          %s134 = int_to_ptr.vmem [resolvable:$true] %s133
          %136 = dma.hbm_to_vmem [thread:$0]  %s131, 1024, %s134, %s122
        $region24: #{tpu_custom_call.1} parent=19 // pred_fallthru
          _
      $region20: #{tpu_custom_call.1} parent=5 // pred_fallthru
        _
      %p137 = scmp.le.s32.totalorder 1, %s15
      %p138 = scmp.lt.s32.totalorder %s15, 3
      %p139 = pnand %p137, %p138
      %p140 = pneg %p139
      // Predicated region
      $region25: #{tpu_custom_call.1} parent=5 // pred_check
        _
      $region26: #{tpu_custom_call.1} parent=5 // pred_check_branch
        %142 = sbr.rel (%p139) target = $region28
      $region27: #{tpu_custom_call.1} parent=5 // pred_region
        %s143 = ssub.s32 %s15, 1
        // Predicated region
        $region29: #{tpu_custom_call.1} parent=27 // pred_check
          %p144 = pneg %p36
        $region30: #{tpu_custom_call.1} parent=27 // pred_check_branch
          %146 = sbr.rel (%p144) target = $region32
        $region31: #{tpu_custom_call.1} parent=27 // pred_region
          %147 = dma.done [#allocation3], 16
        $region32: #{tpu_custom_call.1} parent=27 // pred_fallthru
          _
        %s148 = sand.u32 %s49, 1
        %s149 = scalar_lea.sflag [#allocation6], %s148
        %s150 = sand.u32 %s49, 1
        %s151 = smul.addr %s150, 64
        %s152 = scalar_lea.vmem [#allocation5], %s151
        // Predicated region
        $region33: #{tpu_custom_call.1} parent=27 // pred_check
          %p153 = pneg %p62
        $region34: #{tpu_custom_call.1} parent=27 // pred_check_branch
          %155 = sbr.rel (%p153) target = $region36
        $region35: #{tpu_custom_call.1} parent=27 // pred_region
          %156 = dma.done %s149, 1024
        $region36: #{tpu_custom_call.1} parent=27 // pred_fallthru
          _
        %p157 = pneg %p36
        %p158 = pneg %p33
        %s159 = sand.u32 %s49, 1
        %s160 = scalar_lea.sflag [#allocation6], %s159
        %s161 = sand.u32 %s49, 1
        %s162 = smul.addr %s161, 64
        %s163 = scalar_lea.vmem [#allocation5], %s162
        %p164 = pneg %p62
        %p165 = pneg %p59
        %p166 = pneg %p88
        %p167 = pneg %p85
        %s168 = sand.u32 %s75, 1
        %s169 = scalar_lea.sflag [#allocation4], %s168
        %s170 = sand.u32 %s75, 1
        %s171 = smul.addr %s170, 64
        %s172 = scalar_lea.vmem [#allocation7], %s171
        %v173 = vld [vmem:[#allocation2] sm:$0x1]
        %v174 = vld [vmem:[%s152] sm:$0xff]
        %v176 = vlaneseq
        %v177 = vshrl.u32 %v176, 7
        %v178 = vsub.s32 0, %v177
        %v179 = vrot.slane %v173, %v178
        %180 = vset.pattern.permute.xlu0 0
        %181 = vperm.xlu0 %180, %v179
        %v182 = vpop.permute.xlu0 %181
        %v184 = vmul.f32 %v174, %v182
        %185 = vset.pattern.permute.xlu0 1
        %186 = vperm.xlu0 %185, %v179
        %v187 = vpop.permute.xlu0 %186
        %v189 = vmul.f32 %v174, %v187
        %191 = vrot.lane.b32.xlu0 %v189, 64
        %v192 = vpop.permute.xlu0 %191
        %v194 = vadd.f32 %v184, %v192
        %v195 = vld [vmem:[%s152 + $0x8] sm:$0xff]
        %196 = vset.pattern.permute.xlu0 2
        %197 = vperm.xlu0 %196, %v179
        %v198 = vpop.permute.xlu0 %197
        %v200 = vmul.f32 %v195, %v198
        %v201 = vadd.f32 %v194, %v200
        %202 = vset.pattern.permute.xlu0 3
        %203 = vperm.xlu0 %202, %v179
        %v204 = vpop.permute.xlu0 %203
        %v206 = vmul.f32 %v195, %v204
        %208 = vrot.lane.b32.xlu0 %v206, 64
        %v209 = vpop.permute.xlu0 %208
        %v211 = vadd.f32 %v201, %v209
        %v212 = vld [vmem:[%s152 + $0x10] sm:$0xff]
        %213 = vset.pattern.permute.xlu0 4
        %214 = vperm.xlu0 %213, %v179
        %v215 = vpop.permute.xlu0 %214
        %v217 = vmul.f32 %v212, %v215
        %v218 = vadd.f32 %v211, %v217
        %219 = vset.pattern.permute.xlu0 5
        %220 = vperm.xlu0 %219, %v179
        %v221 = vpop.permute.xlu0 %220
        %v223 = vmul.f32 %v212, %v221
        %225 = vrot.lane.b32.xlu0 %v223, 64
        %v226 = vpop.permute.xlu0 %225
        %v228 = vadd.f32 %v218, %v226
        %v229 = vld [vmem:[%s152 + $0x18] sm:$0xff]
        %230 = vset.pattern.permute.xlu0 6
        %231 = vperm.xlu0 %230, %v179
        %v232 = vpop.permute.xlu0 %231
        %v234 = vmul.f32 %v229, %v232
        %v235 = vadd.f32 %v228, %v234
        %236 = vset.pattern.permute.xlu0 7
        %237 = vperm.xlu0 %236, %v179
        %v238 = vpop.permute.xlu0 %237
        %v240 = vmul.f32 %v229, %v238
        %242 = vrot.lane.b32.xlu0 %v240, 64
        %v243 = vpop.permute.xlu0 %242
        %v245 = vadd.f32 %v235, %v243
        %v246 = vld [vmem:[%s152 + $0x20] sm:$0xff]
        %247 = vset.pattern.permute.xlu0 8
        %248 = vperm.xlu0 %247, %v179
        %v249 = vpop.permute.xlu0 %248
        %v251 = vmul.f32 %v246, %v249
        %v252 = vadd.f32 %v245, %v251
        %253 = vset.pattern.permute.xlu0 9
        %254 = vperm.xlu0 %253, %v179
        %v255 = vpop.permute.xlu0 %254
        %v257 = vmul.f32 %v246, %v255
        %259 = vrot.lane.b32.xlu0 %v257, 64
        %v260 = vpop.permute.xlu0 %259
        %v262 = vadd.f32 %v252, %v260
        %v263 = vld [vmem:[%s152 + $0x28] sm:$0xff]
        %264 = vset.pattern.permute.xlu0 10
        %265 = vperm.xlu0 %264, %v179
        %v266 = vpop.permute.xlu0 %265
        %v268 = vmul.f32 %v263, %v266
        %v269 = vadd.f32 %v262, %v268
        %270 = vset.pattern.permute.xlu0 11
        %271 = vperm.xlu0 %270, %v179
        %v272 = vpop.permute.xlu0 %271
        %v274 = vmul.f32 %v263, %v272
        %276 = vrot.lane.b32.xlu0 %v274, 64
        %v277 = vpop.permute.xlu0 %276
        %v279 = vadd.f32 %v269, %v277
        %v280 = vld [vmem:[%s152 + $0x30] sm:$0xff]
        %281 = vset.pattern.permute.xlu0 12
        %282 = vperm.xlu0 %281, %v179
        %v283 = vpop.permute.xlu0 %282
        %v285 = vmul.f32 %v280, %v283
        %v286 = vadd.f32 %v279, %v285
        %287 = vset.pattern.permute.xlu0 13
        %288 = vperm.xlu0 %287, %v179
        %v289 = vpop.permute.xlu0 %288
        %v291 = vmul.f32 %v280, %v289
        %293 = vrot.lane.b32.xlu0 %v291, 64
        %v294 = vpop.permute.xlu0 %293
        %v296 = vadd.f32 %v286, %v294
        %v297 = vld [vmem:[%s152 + $0x38] sm:$0xff]
        %298 = vset.pattern.permute.xlu0 14
        %299 = vperm.xlu0 %298, %v179
        %v300 = vpop.permute.xlu0 %299
        %v302 = vmul.f32 %v297, %v300
        %v303 = vadd.f32 %v296, %v302
        %304 = vset.pattern.permute.xlu0 15
        %305 = vperm.xlu0 %304, %v179
        %v306 = vpop.permute.xlu0 %305
        %v308 = vmul.f32 %v297, %v306
        %310 = vrot.lane.b32.xlu0 %v308, 64
        %v311 = vpop.permute.xlu0 %310
        %v313 = vadd.f32 %v303, %v311
        %v314 = vmul.f32 %v313, %v313
        %vm315 = vcmask 523264
        %v316 = vsel %vm315, %v314, 0.0
        %317 = vadd.xlane.f32.xlu0 %v316
        %v318 = vpop.xlane.xlu0 %317
        %v319 = vmax.f32 %v318, 1e-24
        %v320 = vrsqrt.pop %v319
        %v321 = vmul.f32 %v313, %v320
        %v322 = vmul.f32 %v174, %v321
        %v323 = vsel %vm315, %v322, 0.0
        %324 = vadd.xlane.f32.xlu0 %v323
        %v325 = vpop.xlane.xlu0 %324
        %327 = vrot.lane.b32.xlu0 %v321, 64
        %v328 = vpop.permute.xlu0 %327
        %v330 = vmul.f32 %v174, %v328
        %332 = vrot.lane.b32.xlu0 %v330, 64
        %v333 = vpop.permute.xlu0 %332
        %v335 = vsel %vm315, %v333, 0.0
        %336 = vadd.xlane.f32.xlu0 %v335
        %v337 = vpop.xlane.xlu0 %336
        %v338 = vmul.f32 %v195, %v321
        %v339 = vsel %vm315, %v338, 0.0
        %340 = vadd.xlane.f32.xlu0 %v339
        %v341 = vpop.xlane.xlu0 %340
        %v342 = vmul.f32 %v195, %v328
        %344 = vrot.lane.b32.xlu0 %v342, 64
        %v345 = vpop.permute.xlu0 %344
        %v347 = vsel %vm315, %v345, 0.0
        %348 = vadd.xlane.f32.xlu0 %v347
        %v349 = vpop.xlane.xlu0 %348
        %v350 = vmul.f32 %v212, %v321
        %v351 = vsel %vm315, %v350, 0.0
        %352 = vadd.xlane.f32.xlu0 %v351
        %v353 = vpop.xlane.xlu0 %352
        %v354 = vmul.f32 %v212, %v328
        %356 = vrot.lane.b32.xlu0 %v354, 64
        %v357 = vpop.permute.xlu0 %356
        %v359 = vsel %vm315, %v357, 0.0
        %360 = vadd.xlane.f32.xlu0 %v359
        %v361 = vpop.xlane.xlu0 %360
        %v362 = vmul.f32 %v229, %v321
        %v363 = vsel %vm315, %v362, 0.0
        %364 = vadd.xlane.f32.xlu0 %v363
        %v365 = vpop.xlane.xlu0 %364
        %v366 = vmul.f32 %v229, %v328
        %368 = vrot.lane.b32.xlu0 %v366, 64
        %v369 = vpop.permute.xlu0 %368
        %v371 = vsel %vm315, %v369, 0.0
        %372 = vadd.xlane.f32.xlu0 %v371
        %v373 = vpop.xlane.xlu0 %372
        %v374 = vmul.f32 %v246, %v321
        %v375 = vsel %vm315, %v374, 0.0
        %376 = vadd.xlane.f32.xlu0 %v375
        %v377 = vpop.xlane.xlu0 %376
        %v378 = vmul.f32 %v246, %v328
        %380 = vrot.lane.b32.xlu0 %v378, 64
        %v381 = vpop.permute.xlu0 %380
        %v383 = vsel %vm315, %v381, 0.0
        %384 = vadd.xlane.f32.xlu0 %v383
        %v385 = vpop.xlane.xlu0 %384
        %v386 = vmul.f32 %v263, %v321
        %v387 = vsel %vm315, %v386, 0.0
        %388 = vadd.xlane.f32.xlu0 %v387
        %v389 = vpop.xlane.xlu0 %388
        %v390 = vmul.f32 %v263, %v328
        %392 = vrot.lane.b32.xlu0 %v390, 64
        %v393 = vpop.permute.xlu0 %392
        %v395 = vsel %vm315, %v393, 0.0
        %396 = vadd.xlane.f32.xlu0 %v395
        %v397 = vpop.xlane.xlu0 %396
        %v398 = vmul.f32 %v280, %v321
        %v399 = vsel %vm315, %v398, 0.0
        %400 = vadd.xlane.f32.xlu0 %v399
        %v401 = vpop.xlane.xlu0 %400
        %v402 = vmul.f32 %v280, %v328
        %404 = vrot.lane.b32.xlu0 %v402, 64
        %v405 = vpop.permute.xlu0 %404
        %v407 = vsel %vm315, %v405, 0.0
        %408 = vadd.xlane.f32.xlu0 %v407
        %v409 = vpop.xlane.xlu0 %408
        %v410 = vmul.f32 %v297, %v321
        %v411 = vsel %vm315, %v410, 0.0
        %412 = vadd.xlane.f32.xlu0 %v411
        %v413 = vpop.xlane.xlu0 %412
        %v414 = vmul.f32 %v297, %v328
        %416 = vrot.lane.b32.xlu0 %v414, 64
        %v417 = vpop.permute.xlu0 %416
        %v419 = vsel %vm315, %v417, 0.0
        %420 = vadd.xlane.f32.xlu0 %v419
        %v421 = vpop.xlane.xlu0 %420
        %v422 = vmul.f32 %v325, %v325
        %v423 = vmul.f32 %v337, %v337
        %v424 = vadd.f32 %v422, %v423
        %v425 = vmul.f32 %v341, %v341
        %v426 = vadd.f32 %v424, %v425
        %v427 = vmul.f32 %v349, %v349
        %v428 = vadd.f32 %v426, %v427
        %v429 = vmul.f32 %v353, %v353
        %v430 = vadd.f32 %v428, %v429
        %v431 = vmul.f32 %v361, %v361
        %v432 = vadd.f32 %v430, %v431
        %v433 = vmul.f32 %v365, %v365
        %v434 = vadd.f32 %v432, %v433
        %v435 = vmul.f32 %v373, %v373
        %v436 = vadd.f32 %v434, %v435
        %v437 = vmul.f32 %v377, %v377
        %v438 = vadd.f32 %v436, %v437
        %v439 = vmul.f32 %v385, %v385
        %v440 = vadd.f32 %v438, %v439
        %v441 = vmul.f32 %v389, %v389
        %v442 = vadd.f32 %v440, %v441
        %v443 = vmul.f32 %v397, %v397
        %v444 = vadd.f32 %v442, %v443
        %v445 = vmul.f32 %v401, %v401
        %v446 = vadd.f32 %v444, %v445
        %v447 = vmul.f32 %v409, %v409
        %v448 = vadd.f32 %v446, %v447
        %v449 = vmul.f32 %v413, %v413
        %v450 = vadd.f32 %v448, %v449
        %v451 = vmul.f32 %v421, %v421
        %v452 = vadd.f32 %v450, %v451
        %v453 = vmax.f32 %v452, 1e-24
        %v454 = vrsqrt.pop %v453
        %v455 = vmul.f32 %v325, %v454
        %v456 = vmul.f32 %v337, %v454
        %v457 = vmul.f32 %v341, %v454
        %v458 = vmul.f32 %v349, %v454
        %v459 = vmul.f32 %v353, %v454
        %v460 = vmul.f32 %v361, %v454
        %v461 = vmul.f32 %v365, %v454
        %v462 = vmul.f32 %v373, %v454
        %v463 = vmul.f32 %v377, %v454
        %v464 = vmul.f32 %v385, %v454
        %v465 = vmul.f32 %v389, %v454
        %v466 = vmul.f32 %v397, %v454
        %v467 = vmul.f32 %v401, %v454
        %v468 = vmul.f32 %v409, %v454
        %v469 = vmul.f32 %v413, %v454
        %v470 = vmul.f32 %v421, %v454
        %v471 = vmul.f32 %v452, %v454
        %v472 = vrsqrt.pop %v471
        %v473 = vmul.f32 %v471, %v472
        %vm474 = vcmp.eq.f32.partialorder %v471, inf
        %v475 = vsel %vm474, %v471, %v473
        %vm476 = vcmp.eq.f32.partialorder %v471, 0.0
        %v477 = vand.u32 %v471, 2147483648
        %v478 = vsel %vm476, %v477, %v475
        %v479 = vadd.f32 %v478, 1e-05
        %v480 = vrcp.pop %v479
        %v481 = vmul.f32 1.0, %v480
        %v482 = vmul.f32 %v471, %v481
        %v483 = vsub.f32 %v478, %v482
        %v484 = vmul.f32 %v483, %v455
        %v485 = vmul.f32 %v484, %v321
        %v486 = vmul.f32 %v481, %v174
        %v487 = vadd.f32 %v485, %v486
        %v488 = vmul.f32 %v483, %v456
        %v489 = vmul.f32 %v488, %v321
        %491 = vrot.lane.b32.xlu0 %v486, 64
        %v492 = vpop.permute.xlu0 %491
        %v494 = vadd.f32 %v489, %v492
        %496 = vrot.lane.b32.xlu0 %v494, 64
        %v497 = vpop.permute.xlu0 %496
        %v499 = vsel %vm315, %v487, %v497
        %500 = vst [vmem:[%s172] sm:$0xff] %v499
        %v501 = vmul.f32 %v483, %v457
        %v502 = vmul.f32 %v501, %v321
        %v503 = vld [vmem:[%s152 + $0x8] sm:$0xff]
        %v504 = vmul.f32 %v481, %v503
        %v505 = vadd.f32 %v502, %v504
        %v506 = vmul.f32 %v483, %v458
        %v507 = vmul.f32 %v506, %v321
        %509 = vrot.lane.b32.xlu0 %v504, 64
        %v510 = vpop.permute.xlu0 %509
        %v512 = vadd.f32 %v507, %v510
        %514 = vrot.lane.b32.xlu0 %v512, 64
        %v515 = vpop.permute.xlu0 %514
        %v517 = vsel %vm315, %v505, %v515
        %518 = vst [vmem:[%s172 + $0x8] sm:$0xff] %v517
        %v519 = vmul.f32 %v483, %v459
        %v520 = vmul.f32 %v519, %v321
        %v521 = vld [vmem:[%s152 + $0x10] sm:$0xff]
        %v522 = vmul.f32 %v481, %v521
        %v523 = vadd.f32 %v520, %v522
        %v524 = vmul.f32 %v483, %v460
        %v525 = vmul.f32 %v524, %v321
        %527 = vrot.lane.b32.xlu0 %v522, 64
        %v528 = vpop.permute.xlu0 %527
        %v530 = vadd.f32 %v525, %v528
        %532 = vrot.lane.b32.xlu0 %v530, 64
        %v533 = vpop.permute.xlu0 %532
        %v535 = vsel %vm315, %v523, %v533
        %536 = vst [vmem:[%s172 + $0x10] sm:$0xff] %v535
        %v537 = vmul.f32 %v483, %v461
        %v538 = vmul.f32 %v537, %v321
        %v539 = vld [vmem:[%s152 + $0x18] sm:$0xff]
        %v540 = vmul.f32 %v481, %v539
        %v541 = vadd.f32 %v538, %v540
        %v542 = vmul.f32 %v483, %v462
        %v543 = vmul.f32 %v542, %v321
        %545 = vrot.lane.b32.xlu0 %v540, 64
        %v546 = vpop.permute.xlu0 %545
        %v548 = vadd.f32 %v543, %v546
        %550 = vrot.lane.b32.xlu0 %v548, 64
        %v551 = vpop.permute.xlu0 %550
        %v553 = vsel %vm315, %v541, %v551
        %554 = vst [vmem:[%s172 + $0x18] sm:$0xff] %v553
        %v555 = vmul.f32 %v483, %v463
        %v556 = vmul.f32 %v555, %v321
        %v557 = vld [vmem:[%s152 + $0x20] sm:$0xff]
        %v558 = vmul.f32 %v481, %v557
        %v559 = vadd.f32 %v556, %v558
        %v560 = vmul.f32 %v483, %v464
        %v561 = vmul.f32 %v560, %v321
        %563 = vrot.lane.b32.xlu0 %v558, 64
        %v564 = vpop.permute.xlu0 %563
        %v566 = vadd.f32 %v561, %v564
        %568 = vrot.lane.b32.xlu0 %v566, 64
        %v569 = vpop.permute.xlu0 %568
        %v571 = vsel %vm315, %v559, %v569
        %572 = vst [vmem:[%s172 + $0x20] sm:$0xff] %v571
        %v573 = vmul.f32 %v483, %v465
        %v574 = vmul.f32 %v573, %v321
        %v575 = vld [vmem:[%s152 + $0x28] sm:$0xff]
        %v576 = vmul.f32 %v481, %v575
        %v577 = vadd.f32 %v574, %v576
        %v578 = vmul.f32 %v483, %v466
        %v579 = vmul.f32 %v578, %v321
        %581 = vrot.lane.b32.xlu0 %v576, 64
        %v582 = vpop.permute.xlu0 %581
        %v584 = vadd.f32 %v579, %v582
        %586 = vrot.lane.b32.xlu0 %v584, 64
        %v587 = vpop.permute.xlu0 %586
        %v589 = vsel %vm315, %v577, %v587
        %590 = vst [vmem:[%s172 + $0x28] sm:$0xff] %v589
        %v591 = vmul.f32 %v483, %v467
        %v592 = vmul.f32 %v591, %v321
        %v593 = vld [vmem:[%s152 + $0x30] sm:$0xff]
        %v594 = vmul.f32 %v481, %v593
        %v595 = vadd.f32 %v592, %v594
        %v596 = vmul.f32 %v483, %v468
        %v597 = vmul.f32 %v596, %v321
        %599 = vrot.lane.b32.xlu0 %v594, 64
        %v600 = vpop.permute.xlu0 %599
        %v602 = vadd.f32 %v597, %v600
        %604 = vrot.lane.b32.xlu0 %v602, 64
        %v605 = vpop.permute.xlu0 %604
        %v607 = vsel %vm315, %v595, %v605
        %608 = vst [vmem:[%s172 + $0x30] sm:$0xff] %v607
        %v609 = vmul.f32 %v483, %v469
        %v610 = vmul.f32 %v609, %v321
        %v611 = vld [vmem:[%s152 + $0x38] sm:$0xff]
        %v612 = vmul.f32 %v481, %v611
        %v613 = vadd.f32 %v610, %v612
        %v614 = vmul.f32 %v483, %v470
        %v615 = vmul.f32 %v614, %v321
        %617 = vrot.lane.b32.xlu0 %v612, 64
        %v618 = vpop.permute.xlu0 %617
        %v620 = vadd.f32 %v615, %v618
        %622 = vrot.lane.b32.xlu0 %v620, 64
        %v623 = vpop.permute.xlu0 %622
        %v625 = vsel %vm315, %v613, %v623
        %626 = vst [vmem:[%s172 + $0x38] sm:$0xff] %v625
        %s627 = sand.u32 %s75, 1
        %s628 = scalar_lea.sflag [#allocation4], %s627
        %s629 = sand.u32 %s75, 1
        %s630 = smul.addr %s629, 64
        %s631 = scalar_lea.vmem [#allocation7], %s630
        // Predicated region
        $region37: #{tpu_custom_call.1} parent=27 // pred_check
          %p632 = pneg %p85
        $region38: #{tpu_custom_call.1} parent=27 // pred_check_branch
          %634 = sbr.rel (%p632) target = $region40
        $region39: #{tpu_custom_call.1} parent=27 // pred_region
          %s636 = ssub.s32 1024, 1024
          %637 = vsyncadd %s628, %s636
          %s638 = smul.addr %s20, 8
          %s639 = smul.addr %s638, 128
          %s640 = scalar_lea.hbm %s2, %s639
          %s642 = sshll.u32 %s631, 4
          %s643 = int_to_ptr.vmem [resolvable:$true] %s642
          %645 = dma.vmem_to_hbm [thread:$0]  %s643, 1024, %s640, %s628
        $region40: #{tpu_custom_call.1} parent=27 // pred_fallthru
          _
      $region28: #{tpu_custom_call.1} parent=5 // pred_fallthru
        _
      %p646 = scmp.le.s32.totalorder 2, %s15
      // Predicated region
      $region41: #{tpu_custom_call.1} parent=5 // pred_check
        %p647 = pneg %p646
      $region42: #{tpu_custom_call.1} parent=5 // pred_check_branch
        %649 = sbr.rel (%p647) target = $region44
      $region43: #{tpu_custom_call.1} parent=5 // pred_region
        %s650 = ssub.s32 %s15, 2
        // Predicated region
        $region45: #{tpu_custom_call.1} parent=43 // pred_check
          %p651 = pneg %p91
        $region46: #{tpu_custom_call.1} parent=43 // pred_check_branch
          %653 = sbr.rel (%p651) target = $region48
        $region47: #{tpu_custom_call.1} parent=43 // pred_region
          %s654 = sand.u32 %s76, 1
          %s655 = scalar_lea.sflag [#allocation4], %s654
          %s656 = sand.u32 %s76, 1
          %s657 = smul.addr %s656, 64
          %s658 = scalar_lea.vmem [#allocation7], %s657
          %659 = dma.done %s655, 1024
        $region48: #{tpu_custom_call.1} parent=43 // pred_fallthru
          _
      $region44: #{tpu_custom_call.1} parent=5 // pred_fallthru
        _
    $region6: #{tpu_custom_call.1} parent=1 // loop_footer
      %s19 = sadd.s32 1, %s15
    $region7: #{tpu_custom_call.1} parent=1 // loop_footer_branch
      %14 = sbr.rel target = $region3
    $region8: #{tpu_custom_call.1} parent=1 // loop_exit
      _
    %660 = vsyncpa [#allocation3], 1
    %s661 = scalar_lea.sflag [#allocation3], 1
    %662 = vsyncpa %s661, 1
    %663 = vsyncpa [#allocation6], 1
    %s664 = scalar_lea.sflag [#allocation6], 1
    %665 = vsyncpa %s664, 1
    %666 = vsyncpa [#allocation4], 1
    %s667 = scalar_lea.sflag [#allocation4], 1
    %668 = vsyncpa %s667, 1

</llo_original>
